<compile_context>
chip_gen: v6e
topology: v6e:2x2x1
jax: 0.10.0
libtpu: 0.0.40
codegen_flags: <defaults>
</compile_context>

<pallas_src>
import functools

import jax
import jax.numpy as jnp
from jax.experimental import pallas as pl
from jax.experimental.pallas import tpu as pltpu


def _round_up(x, m):
    return ((x + m - 1) // m) * m


def _attention2d_kernel(x_ref, w1t_ref, w2t_ref, b2_ref, out_ref, acc_ref, *,
                        hw, tile_hw, inv_hw, inv_temperature, ragged):
    # x_ref: [tB, C, tHW] (HW on lanes)   w1t_ref: [C, Hd]   w2t_ref: [Hd, K]
    # b2_ref: [1, K]   out_ref: [tB, K]   acc_ref: [tB, C, tHW] f32 scratch
    s = pl.program_id(1)

    @pl.when(s == 0)
    def _init():
        acc_ref[...] = jnp.zeros_like(acc_ref)

    x = x_ref[...].astype(jnp.float32)        # stream native dtype, cast per tile
    if ragged:
        # Mask the out-of-bounds lanes of the (possibly) ragged last HW tile.
        lane = jax.lax.broadcasted_iota(jnp.int32, x.shape, dimension=2)
        x = jnp.where(lane + s * tile_hw < hw, x, 0.0)
    # Pure VPU vreg adds per step; the lane-axis collapse is deferred to finalize.
    acc_ref[...] += x

    @pl.when(s == pl.num_programs(1) - 1)
    def _finalize():
        # AdaptiveAvgPool2d(1): single lane-axis reduce + scale by the true 1/(H*W).
        pooled = jnp.sum(acc_ref[...], axis=-1) * jnp.float32(inv_hw)     # [tB, C]

        # fc1 (1x1 conv, no bias) + ReLU.
        h = jnp.dot(pooled, w1t_ref[...], preferred_element_type=jnp.float32)
        h = jnp.maximum(h, 0.0)                                           # [tB, Hd]

        # fc2 (1x1 conv, bias).
        logits = jnp.dot(h, w2t_ref[...], preferred_element_type=jnp.float32)
        logits = logits + b2_ref[...]                                     # [tB, K]

        # softmax(logits / T): fold 1/T into a multiply, stable exp, EUP approx
        # reciprocal + one Newton step (keeps full f32 accuracy).
        z = logits * jnp.float32(inv_temperature)
        z = z - jnp.max(z, axis=-1, keepdims=True)
        e = jnp.exp(z)
        denom = jnp.sum(e, axis=-1, keepdims=True)
        r = pl.reciprocal(denom, approx=True)
        r = r * (2.0 - denom * r)
        out_ref[...] = (e * r).astype(out_ref.dtype)


def _vmem_capacity_bytes():
    """Physical VMEM of the current chip (v5e/v6e 128 MiB, v7x 64 MiB per TC)."""
    try:
        info = pltpu.get_tpu_info()
        cap = getattr(info, "vmem_capacity_bytes", None)
        if cap:
            return int(cap)
    except Exception:
        pass
    return 64 * 1024 * 1024   # conservative fallback (v7x per-TC physical)


def _pick_block_b(B, block_b):
    if block_b is not None:
        assert B % block_b == 0, "block_b must divide B"
        assert block_b == B or block_b % 8 == 0, \
            "output block needs block_b % 8 == 0 or block_b == B"
        return block_b
    # Prefer >= 2 B-tiles (keeps both v7x TensorCores busy on the 'parallel'
    # axis) whenever the (8,128) output-block constraint allows it.
    if B % 8 == 0 and B >= 16:
        best = 8
        for cand in range(8, B // 2 + 1, 8):
            if B % cand == 0:
                best = cand
        return best
    return B


def _pick_block_hw(tB, C, HW, itemsize, block_hw):
    """Pick the HW (lane-axis) tile from the *padded* VMEM footprint:
    2 double-buffered x tiles (native dtype) + 1 f32 lane-width accumulator,
    with C rounded up to the sublane multiple of 8."""
    c_pad = _round_up(max(C, 1), 8)
    per_hw = tB * c_pad * (2 * itemsize + 4)         # bytes per HW element resident
    cap = _vmem_capacity_bytes()
    budget = max(8 << 20, min(cap // 2, 48 << 20))   # generation-aware, w/ headroom

    if block_hw is None:
        if HW * per_hw <= budget or HW <= 128:
            block_hw = HW                            # single step over the full extent
        else:
            block_hw = max(128, (budget // per_hw) // 128 * 128)
            block_hw = min(block_hw, (HW // 128) * 128)
    assert block_hw == HW or block_hw % 128 == 0, \
        "block_hw must equal H*W or be a multiple of 128"

    vmem_needed = per_hw * block_hw
    vmem_limit = int(min(cap, max(vmem_needed * 3 // 2 + (4 << 20), 16 << 20)))
    return block_hw, vmem_limit


def attention2d_forward(x_nchw, w1, w2, b2, temperature, *,
                        block_b=None, block_hw=None):
    """x_nchw: [B, C, H, W] (NCHW, like PyTorch).  Returns softmax weights [B, K]."""
    B, C, H, W = x_nchw.shape
    HW = H * W
    Hd = w1.shape[0]   # w1: [hidden_planes, C]
    K = w2.shape[0]    # w2: [K, hidden_planes]

    # Copy-free contiguous view: C on sublanes, HW on the 128-lane axis.
    x_bchw = x_nchw.reshape(B, C, HW)
    itemsize = jnp.dtype(x_bchw.dtype).itemsize

    tB = _pick_block_b(B, block_b)
    tHW, vmem_limit = _pick_block_hw(tB, C, HW, itemsize, block_hw)
    n_hw = pl.cdiv(HW, tHW)
    ragged = (HW % tHW) != 0

    w1t = jnp.transpose(w1).astype(jnp.float32)     # [C, Hd]
    w2t = jnp.transpose(w2).astype(jnp.float32)     # [Hd, K]
    b2_row = b2.reshape(1, K).astype(jnp.float32)   # [1, K]

    kernel = functools.partial(
        _attention2d_kernel,
        hw=HW, tile_hw=tHW,
        inv_hw=1.0 / float(HW),
        inv_temperature=1.0 / float(temperature),
        ragged=ragged,
    )

    # Advisory cost hint: this call is purely HBM-bound on x.
    cost = pl.CostEstimate(
        flops=int(B * HW * C + 2 * B * C * Hd + 2 * B * Hd * K + 8 * B * K),
        transcendentals=int(B * K),
        bytes_accessed=int(B * HW * C * itemsize
                           + (C * Hd + Hd * K + K) * 4 + B * K * 4),
    )

    return pl.pallas_call(
        kernel,
        out_shape=jax.ShapeDtypeStruct((B, K), jnp.float32),
        grid=(B // tB, n_hw),
        in_specs=[
            pl.BlockSpec((tB, C, tHW), lambda b, s: (b, 0, s)),
            pl.BlockSpec((C, Hd), lambda b, s: (0, 0)),
            pl.BlockSpec((Hd, K), lambda b, s: (0, 0)),
            pl.BlockSpec((1, K), lambda b, s: (0, 0)),
        ],
        out_specs=pl.BlockSpec((tB, K), lambda b, s: (b, 0)),
        scratch_shapes=[pltpu.VMEM((tB, C, tHW), jnp.float32)],
        compiler_params=pltpu.CompilerParams(
            dimension_semantics=("parallel", "arbitrary"),
            vmem_limit_bytes=vmem_limit,
        ),
        cost_estimate=cost,
    )(x_bchw, w1t, w2t, b2_row)


def init_params(key, in_planes, ratios, K):
    """Deterministic kaiming_normal_(mode='fan_out', nonlinearity='relu') init,
    matching attention2d._initialize_weights (biases zeroed)."""
    if in_planes != 3:
        hidden_planes = int(in_planes * ratios) + 1
    else:
        hidden_planes = K
    k1, k2 = jax.random.split(key)
    # Conv2d weight [out, in, 1, 1]; fan_out = out_channels * 1 * 1.
    std1 = (2.0 / hidden_planes) ** 0.5
    std2 = (2.0 / K) ** 0.5
    w1 = std1 * jax.random.normal(k1, (hidden_planes, in_planes), dtype=jnp.float32)
    w2 = std2 * jax.random.normal(k2, (K, hidden_planes), dtype=jnp.float32)
    b2 = jnp.zeros((K,), dtype=jnp.float32)
    return w1, w2, b2


def reference_forward(x_nchw, w1, w2, b2, temperature):
    """Pure-JAX reference for a sanity check."""
    pooled = jnp.mean(x_nchw, axis=(2, 3))                 # [B, C]
    h = jnp.maximum(pooled @ w1.T, 0.0)                    # [B, Hd]
    logits = h @ w2.T + b2                                 # [B, K]
    return jax.nn.softmax(logits / temperature, axis=1)


# TODO(synk): updata_temperature() is training-loop state mutation, not part of
# the forward pass; the temperature is simply a scalar argument here.

if __name__ == "__main__":
    key = jax.random.PRNGKey(0)
    ratios, K, temperature = 0.25, 4, 31   # 31 % 3 == 1, as asserted in __init__

    # 1) Small config from the module: in_planes=4, 16x16 spatial, B=2.
    #    Auto-picked tiles -> single HW step, whole extent on the lane axis.
    B, C, H, W = 2, 4, 16, 16
    kx, kp, key = jax.random.split(key, 3)
    x = jax.random.normal(kx, (B, C, H, W), dtype=jnp.float32)
    w1, w2, b2 = init_params(kp, C, ratios, K)
    ref = reference_forward(x, w1, w2, b2, temperature)
    out = jax.block_until_ready(attention2d_forward(x, w1, w2, b2, temperature))
    assert out.shape == (B, K)
    assert jnp.allclose(out, ref, atol=2e-5, rtol=1e-5)
    assert jnp.allclose(jnp.sum(out, axis=1), 1.0, atol=1e-5)

    # 2) Ragged multi-step HW reduction: HW=225, tile 128 -> 2 steps, in-kernel
    #    iota mask on the tail (no wrapper-side padding copy).
    B, C, H, W = 2, 4, 15, 15
    kx, kp, key = jax.random.split(key, 3)
    x = jax.random.normal(kx, (B, C, H, W), dtype=jnp.float32)
    w1, w2, b2 = init_params(kp, C, ratios, K)
    ref = reference_forward(x, w1, w2, b2, temperature)
    out = jax.block_until_ready(
        attention2d_forward(x, w1, w2, b2, temperature, block_hw=128))
    assert jnp.allclose(out, ref, atol=2e-5, rtol=1e-5)
    assert jnp.allclose(jnp.sum(out, axis=1), 1.0, atol=1e-5)

    # 3) B-tiled 'parallel' path (B=16 -> tB=8, two B-tiles) with bf16 streaming
    #    and a ragged HW tail.
    B, C, H, W = 16, 8, 15, 15
    kx, kp, key = jax.random.split(key, 3)
    x = jax.random.normal(kx, (B, C, H, W), dtype=jnp.float32)
    w1, w2, b2 = init_params(kp, C, ratios, K)
    x_bf = x.astype(jnp.bfloat16)
    ref = reference_forward(x_bf.astype(jnp.float32), w1, w2, b2, temperature)
    out = jax.block_until_ready(
        attention2d_forward(x_bf, w1, w2, b2, temperature, block_hw=128))
    assert out.shape == (B, K)
    assert jnp.allclose(out, ref, atol=1e-3, rtol=1e-3)
    assert jnp.allclose(jnp.sum(out, axis=1), 1.0, atol=1e-4)

    print("KERNEL_OK")
</pallas_src>

<mosaic_0001>
module attributes {stable_mosaic.version = 11 : i64} {
  func.func @_attention2d_kernel(%arg0: i32, %arg1: i32, %arg2: memref<2x4x256xf32, #tpu.memory_space<vmem>>, %arg3: memref<4x2xf32, #tpu.memory_space<vmem>>, %arg4: memref<2x4xf32, #tpu.memory_space<vmem>>, %arg5: memref<1x4xf32, #tpu.memory_space<vmem>>, %arg6: memref<2x4xf32, #tpu.memory_space<vmem>>, %arg7: memref<2x4x256xf32, #tpu.memory_space<vmem>>) attributes {dimension_semantics = [#tpu.dimension_semantics<parallel>, #tpu.dimension_semantics<arbitrary>], iteration_bounds = array<i64: 1, 1>, scalar_prefetch = 0 : i64, scratch_operands = 1 : i64, tpu.core_type = #tpu.core_type<tc>, window_params = [{transform_indices = @transform_0, window_bounds = array<i64: 2, 4, 256>}, {pipeline_mode = #tpu.pipeline_mode<synchronous>, transform_indices = @transform_1, window_bounds = array<i64: 4, 2>}, {pipeline_mode = #tpu.pipeline_mode<synchronous>, transform_indices = @transform_2, window_bounds = array<i64: 2, 4>}, {pipeline_mode = #tpu.pipeline_mode<synchronous>, transform_indices = @transform_3, window_bounds = array<i64: 1, 4>}, {transform_indices = @transform_4, window_bounds = array<i64: 2, 4>}]} {
    %c0_i32 = arith.constant 0 : i32
    %0 = arith.cmpi eq, %arg1, %c0_i32 : i32
    %1 = arith.extui %0 : i1 to i32
    %c0_i32_0 = arith.constant 0 : i32
    %2 = arith.cmpi ne, %1, %c0_i32_0 : i32
    scf.if %2 {
      %cst = arith.constant 0.000000e+00 : f32
      %10 = vector.broadcast %cst : f32 to vector<2x4x256xf32>
      %c0_11 = arith.constant 0 : index
      %c0_12 = arith.constant 0 : index
      %c0_13 = arith.constant 0 : index
      %11 = vector.load %arg7[%c0_11, %c0_12, %c0_13] : memref<2x4x256xf32, #tpu.memory_space<vmem>>, vector<2x4x256xf32>
      tpu.vector_store %arg7[%c0_11, %c0_12, %c0_13], %10 {strides = array<i32>} : memref<2x4x256xf32, #tpu.memory_space<vmem>>, vector<2x4x256xf32>,
    } else {
    }
    %c0 = arith.constant 0 : index
    %c0_1 = arith.constant 0 : index
    %c0_2 = arith.constant 0 : index
    %3 = vector.load %arg2[%c0, %c0_1, %c0_2] : memref<2x4x256xf32, #tpu.memory_space<vmem>>, vector<2x4x256xf32>
    %c0_3 = arith.constant 0 : index
    %c0_4 = arith.constant 0 : index
    %c0_5 = arith.constant 0 : index
    %4 = vector.load %arg7[%c0_3, %c0_4, %c0_5] : memref<2x4x256xf32, #tpu.memory_space<vmem>>, vector<2x4x256xf32>
    %5 = arith.addf %4, %3 : vector<2x4x256xf32>
    %c0_6 = arith.constant 0 : index
    %c0_7 = arith.constant 0 : index
    %c0_8 = arith.constant 0 : index
    %6 = vector.load %arg7[%c0_6, %c0_7, %c0_8] : memref<2x4x256xf32, #tpu.memory_space<vmem>>, vector<2x4x256xf32>
    tpu.vector_store %arg7[%c0_6, %c0_7, %c0_8], %5 {strides = array<i32>} : memref<2x4x256xf32, #tpu.memory_space<vmem>>, vector<2x4x256xf32>,
    %c0_i32_9 = arith.constant 0 : i32
    %7 = arith.cmpi eq, %arg1, %c0_i32_9 : i32
    %8 = arith.extui %7 : i1 to i32
    %c0_i32_10 = arith.constant 0 : i32
    %9 = arith.cmpi ne, %8, %c0_i32_10 : i32
    scf.if %9 {
      %c0_11 = arith.constant 0 : index
      %c0_12 = arith.constant 0 : index
      %c0_13 = arith.constant 0 : index
      %10 = vector.load %arg7[%c0_11, %c0_12, %c0_13] : memref<2x4x256xf32, #tpu.memory_space<vmem>>, vector<2x4x256xf32>
      %cst = arith.constant dense<0.000000e+00> : vector<2x4xf32>
      %11 = vector.multi_reduction <add>, %10, %cst [2] : vector<2x4x256xf32> to vector<2x4xf32>
      %cst_14 = arith.constant 3.906250e-03 : f32
      %12 = vector.broadcast %cst_14 : f32 to vector<2x4xf32>
      %13 = arith.mulf %11, %12 : vector<2x4xf32>
      %c0_15 = arith.constant 0 : index
      %c0_16 = arith.constant 0 : index
      %14 = vector.load %arg3[%c0_15, %c0_16] : memref<4x2xf32, #tpu.memory_space<vmem>>, vector<4x2xf32>
      %cst_17 = arith.constant dense<0.000000e+00> : vector<2x2xf32>
      %15 = tpu.matmul %13, %14, %cst_17 {dimension_numbers = #tpu.dot_dimension_numbers<[1], [0], [0], [1], [0, 0, 1, 1], [], []>} : vector<2x4xf32>, vector<4x2xf32>, vector<2x2xf32> -> vector<2x2xf32>
      %cst_18 = arith.constant 0.000000e+00 : f32
      %16 = vector.broadcast %cst_18 : f32 to vector<2x2xf32>
      %17 = arith.maximumf %15, %16 : vector<2x2xf32>
      %c0_19 = arith.constant 0 : index
      %c0_20 = arith.constant 0 : index
      %18 = vector.load %arg4[%c0_19, %c0_20] : memref<2x4xf32, #tpu.memory_space<vmem>>, vector<2x4xf32>
      %cst_21 = arith.constant dense<0.000000e+00> : vector<2x4xf32>
      %19 = tpu.matmul %17, %18, %cst_21 {dimension_numbers = #tpu.dot_dimension_numbers<[1], [0], [0], [1], [0, 0, 1, 1], [], []>} : vector<2x2xf32>, vector<2x4xf32>, vector<2x4xf32> -> vector<2x4xf32>
      %c0_22 = arith.constant 0 : index
      %c0_23 = arith.constant 0 : index
      %20 = vector.load %arg5[%c0_22, %c0_23] : memref<1x4xf32, #tpu.memory_space<vmem>>, vector<1x4xf32>
      %21 = vector.broadcast %20 : vector<1x4xf32> to vector<2x4xf32>
      %22 = arith.addf %19, %21 : vector<2x4xf32>
      %cst_24 = arith.constant 0.0322580636 : f32
      %23 = vector.broadcast %cst_24 : f32 to vector<2x4xf32>
      %24 = arith.mulf %22, %23 : vector<2x4xf32>
      %cst_25 = arith.constant dense<0xFF800000> : vector<2xf32>
      %25 = vector.multi_reduction <maximumf>, %24, %cst_25 [1] : vector<2x4xf32> to vector<2xf32>
      %26 = vector.shape_cast %25 : vector<2xf32> to vector<2x1xf32>
      %27 = vector.broadcast %26 : vector<2x1xf32> to vector<2x4xf32>
      %28 = arith.subf %24, %27 : vector<2x4xf32>
      %29 = math.exp %28 : vector<2x4xf32>
      %cst_26 = arith.constant dense<0.000000e+00> : vector<2xf32>
      %30 = vector.multi_reduction <add>, %29, %cst_26 [1] : vector<2x4xf32> to vector<2xf32>
      %31 = vector.shape_cast %30 : vector<2xf32> to vector<2x1xf32>
      %32 = tpu.reciprocal %31 {approx = true} : vector<2x1xf32> -> vector<2x1xf32>
      %33 = arith.mulf %31, %32 : vector<2x1xf32>
      %cst_27 = arith.constant 2.000000e+00 : f32
      %34 = vector.broadcast %cst_27 : f32 to vector<2x1xf32>
      %35 = arith.subf %34, %33 : vector<2x1xf32>
      %36 = arith.mulf %32, %35 : vector<2x1xf32>
      %37 = vector.broadcast %36 : vector<2x1xf32> to vector<2x4xf32>
      %38 = arith.mulf %29, %37 : vector<2x4xf32>
      %c0_28 = arith.constant 0 : index
      %c0_29 = arith.constant 0 : index
      %39 = vector.load %arg6[%c0_28, %c0_29] : memref<2x4xf32, #tpu.memory_space<vmem>>, vector<2x4xf32>
      tpu.vector_store %arg6[%c0_28, %c0_29], %38 {strides = array<i32>} : memref<2x4xf32, #tpu.memory_space<vmem>>, vector<2x4xf32>,
    } else {
    }
    return
  }
  func.func @transform_0(%arg0: i32, %arg1: i32) -> (i32, i32, i32) {
    %c0_i32 = arith.constant 0 : i32
    %c0_i32_0 = arith.constant 0 : i32
    return %arg0, %c0_i32, %arg1 : i32, i32, i32
  }
  func.func @transform_1(%arg0: i32, %arg1: i32) -> (i32, i32) {
    %c0_i32 = arith.constant 0 : i32
    %c0_i32_0 = arith.constant 0 : i32
    %c0_i32_1 = arith.constant 0 : i32
    return %c0_i32, %c0_i32_0 : i32, i32
  }
  func.func @transform_2(%arg0: i32, %arg1: i32) -> (i32, i32) {
    %c0_i32 = arith.constant 0 : i32
    %c0_i32_0 = arith.constant 0 : i32
    %c0_i32_1 = arith.constant 0 : i32
    return %c0_i32, %c0_i32_0 : i32, i32
  }
  func.func @transform_3(%arg0: i32, %arg1: i32) -> (i32, i32) {
    %c0_i32 = arith.constant 0 : i32
    %c0_i32_0 = arith.constant 0 : i32
    %c0_i32_1 = arith.constant 0 : i32
    return %c0_i32, %c0_i32_0 : i32, i32
  }
  func.func @transform_4(%arg0: i32, %arg1: i32) -> (i32, i32) {
    %c0_i32 = arith.constant 0 : i32
    %c0_i32_0 = arith.constant 0 : i32
    return %arg0, %c0_i32 : i32, i32
  }
}

</mosaic_0001>

<llo_original>
// kernel: tpu_custom_call.1
$region0: #{tpu_custom_call.1}
  #allocation0 [shape = 'u32[]', space=smem, size = 0x4, offset = 0x4, fixed_abs, tag = 'smem constant byte address 0x4 - core index']
  #allocation1 [shape = 'u32[144,128]{1,0:T(1,128)}', space=vmem, size = 0x12000, scoped, tag = 'internal scratch']
  #allocation2 [shape = 'f32[2,4,256]{2,1,0:T(4,128)}', space=vmem, size = 0x2000, scoped, tag = 'scratch operand']
  %s0 = inlined_call_operand.hbm [shape: f32[2,4,256], index: 0, kind: input, shape index: {}]
  %s1 = inlined_call_operand.vmem [shape: f32[4,2], index: 1, kind: input, shape index: {}]
  %s2 = inlined_call_operand.vmem [shape: f32[2,4], index: 2, kind: input, shape index: {}]
  %s3 = inlined_call_operand.vmem [shape: f32[1,4], index: 3, kind: input, shape index: {}]
  %s4 = inlined_call_operand.hbm [shape: f32[2,4], index: 4, kind: output, shape index: {}]
  %s5 = sld [smem:[#allocation0]]
  $region38: #{tpu_custom_call.1} parent=0
    _
  %s7 = ssub.s32 1, %s5
  %s8 = scalar_select 0, %s7, %s5
  $region1: #{tpu_custom_call.1} parent=0
    #allocation3 [shape = 'u8[8192]{0}', space=vmem, size = 0x2000, scoped, tag = 'input window, operand 0, single buffered']
    #allocation4 [shape = 's32[1]{0}', space=sflag, size = 0x4, scoped, tag = 'scoped memory for tpu_custom_call.1']
    #allocation5 [shape = 's32[1]{0}', space=sflag, size = 0x4, scoped, tag = 'scoped memory for tpu_custom_call.1']
    #allocation6 [shape = 'u8[1024]{0}', space=vmem, size = 0x400, scoped, tag = 'output window, operand 0, single buffered']
    %9 = vsyncpa [#allocation4], 0
    %10 = vsyncpa [#allocation5], 0
    // Predicated region
    $region2: #{tpu_custom_call.1} parent=1 // pred_check
      _
    $region3: #{tpu_custom_call.1} parent=1 // pred_check_branch
      %12 = sbr.rel (0) target = $region5
    $region4: #{tpu_custom_call.1} parent=1 // pred_region
      %s14 = ssub.s32 256, 256
      %15 = vsyncadd [#allocation4], %s14
      %s16 = sshll.u32 [#allocation3], 4
      %s17 = int_to_ptr.vmem [resolvable:$true] %s16
      %22 = dma.hbm_to_vmem [thread:$0]  %s0, 256, %s17, [#allocation4], 128, 128, 8
    $region5: #{tpu_custom_call.1} parent=1 // pred_fallthru
      _
    // Predicated region
    $region6: #{tpu_custom_call.1} parent=1 // pred_check
      _
    $region7: #{tpu_custom_call.1} parent=1 // pred_check_branch
      %24 = sbr.rel (0) target = $region9
    $region8: #{tpu_custom_call.1} parent=1 // pred_region
      _
    $region9: #{tpu_custom_call.1} parent=1 // pred_fallthru
      _
    // Predicated region
    $region10: #{tpu_custom_call.1} parent=1 // pred_check
      _
    $region11: #{tpu_custom_call.1} parent=1 // pred_check_branch
      %26 = sbr.rel (0) target = $region13
    $region12: #{tpu_custom_call.1} parent=1 // pred_region
      _
    $region13: #{tpu_custom_call.1} parent=1 // pred_fallthru
      _
    // Predicated region
    $region14: #{tpu_custom_call.1} parent=1 // pred_check
      _
    $region15: #{tpu_custom_call.1} parent=1 // pred_check_branch
      %28 = sbr.rel (0) target = $region17
    $region16: #{tpu_custom_call.1} parent=1 // pred_region
      _
    $region17: #{tpu_custom_call.1} parent=1 // pred_fallthru
      _
    // Predicated region
    $region18: #{tpu_custom_call.1} parent=1 // pred_check
      _
    $region19: #{tpu_custom_call.1} parent=1 // pred_check_branch
      %30 = sbr.rel (0) target = $region21
    $region20: #{tpu_custom_call.1} parent=1 // pred_region
      %31 = dma.done [#allocation4], 256
    $region21: #{tpu_custom_call.1} parent=1 // pred_fallthru
      _
    %p32 = scmp.eq.s32.totalorder 0, 0
    // Predicated region
    $region22: #{tpu_custom_call.1} parent=1 // pred_check
      %p33 = pneg %p32
    $region23: #{tpu_custom_call.1} parent=1 // pred_check_branch
      %35 = sbr.rel (%p33) target = $region25
    $region24: #{tpu_custom_call.1} parent=1 // pred_region
      %36 = vst [vmem:[#allocation2] sm:$0xff] 0.0
      %37 = vst [vmem:[#allocation2 + $0x8] sm:$0xff] 0.0
    $region25: #{tpu_custom_call.1} parent=1 // pred_fallthru
      _
    %v38 = vld [vmem:[#allocation3] sm:$0xff]
    %v39 = vld [vmem:[#allocation3 + $0x8] sm:$0xff]
    %v40 = vld [vmem:[#allocation2] sm:$0xff]
    %v41 = vld [vmem:[#allocation2 + $0x8] sm:$0xff]
    %v42 = vadd.f32 %v40, %v38
    %v43 = vadd.f32 %v41, %v39
    %44 = vst [vmem:[#allocation2] sm:$0xff] %v42
    %45 = vst [vmem:[#allocation2 + $0x8] sm:$0xff] %v43
    // Predicated region
    $region26: #{tpu_custom_call.1} parent=1 // pred_check
      %p46 = pneg %p32
    $region27: #{tpu_custom_call.1} parent=1 // pred_check_branch
      %48 = sbr.rel (%p46) target = $region29
    $region28: #{tpu_custom_call.1} parent=1 // pred_region
      %v49 = vld [vmem:[#allocation2] sm:$0xff]
      %v50 = vld [vmem:[#allocation2 + $0x8] sm:$0xff]
      %v53 = vcombine.high %v49, %v49
      %v54 = vcombine.high %v50, %v50
      %vm57 = vcmask 1043456
      %v58 = vsel %vm57, %v49, 0.0
      %v59 = vsel %vm57, %v53, 0.0
      %v60 = vadd.f32 %v58, %v59
      %61 = vadd.xlane.f32.xlu0 %v60
      %v62 = vpop.xlane.xlu0 %61
      %v63 = vsel %vm57, %v50, 0.0
      %v64 = vsel %vm57, %v54, 0.0
      %v65 = vadd.f32 %v63, %v64
      %66 = vadd.xlane.f32.xlu0 %v65
      %v67 = vpop.xlane.xlu0 %66
      %v68 = vmul.f32 %v62, 0.00390625
      %v69 = vmul.f32 %v67, 0.00390625
      %v70 = vld [vmem:[%s1] sm:$0xf]
      %v73 = vlaneseq
      %v74 = vand.u32 %v73, 127
      %v75 = vlaneseq
      %v76 = vshrl.u32 %v75, 7
      %v77 = vsub.s32 %v74, %v76
      %v78 = vrot.slane %v68, %v77
      %v79 = vlaneseq
      %v80 = vshrl.u32 %v79, 7
      %v81 = vsub.s32 %v74, %v80
      %v82 = vrot.slane %v69, %v81
      %vm83 = vcmask 1041409
      %v84 = vsel %vm83, %v82, %v78
      %vm85 = vcmask 31744
      %v86 = vsel %vm85, %v84, 0
      %v89 = vsel %vm57, %v70, 0
      %91 = vmatprep.subr.mxu0 0.0
      %92 = vmatpush1.msra.mxu0 0.0
      %93 = vmatprep.subr.mxu0 0.0
      %94 = vmatpush1.msra.mxu0 0.0
      %95 = vmatprep.subr.mxu0 0.0
      %96 = vmatpush1.msra.mxu0 0.0
      %97 = vmatprep.subr.mxu0 0.0
      %98 = vmatpush1.msra.mxu0 0.0
      %99 = vmatprep.subr.mxu0 0.0
      %100 = vmatpush1.msra.mxu0 0.0
      %101 = vmatprep.subr.mxu0 0.0
      %102 = vmatpush1.msra.mxu0 0.0
      %103 = vmatprep.subr.mxu0 0.0
      %104 = vmatpush1.msra.mxu0 0.0
      %105 = vmatprep.subr.mxu0 0.0
      %106 = vmatpush1.msra.mxu0 0.0
      %107 = vmatprep.subr.mxu0 0.0
      %108 = vmatpush1.msra.mxu0 0.0
      %109 = vmatprep.subr.mxu0 0.0
      %110 = vmatpush1.msra.mxu0 0.0
      %111 = vmatprep.subr.mxu0 0.0
      %112 = vmatpush1.msra.mxu0 0.0
      %113 = vmatprep.subr.mxu0 0.0
      %114 = vmatpush1.msra.mxu0 0.0
      %115 = vmatprep.subr.mxu0 0.0
      %116 = vmatpush1.msra.mxu0 0.0
      %117 = vmatprep.subr.mxu0 0.0
      %118 = vmatpush1.msra.mxu0 0.0
      %119 = vmatprep.subr.mxu0 0.0
      %120 = vmatpush1.msra.mxu0 0.0
      %121 = vmatprep.subr.mxu0 0.0
      %122 = vmatpush1.msra.mxu0 %v89
      %123 = vmatprep.subr.mxu0 0.0
      %124 = vmatpush2.msra.mxu0 0.0
      %125 = vmatprep.subr.mxu0 0.0
      %126 = vmatpush2.msra.mxu0 0.0
      %127 = vmatprep.subr.mxu0 0.0
      %128 = vmatpush2.msra.mxu0 0.0
      %129 = vmatprep.subr.mxu0 0.0
      %130 = vmatpush2.msra.mxu0 0.0
      %131 = vmatprep.subr.mxu0 0.0
      %132 = vmatpush2.msra.mxu0 0.0
      %133 = vmatprep.subr.mxu0 0.0
      %134 = vmatpush2.msra.mxu0 0.0
      %135 = vmatprep.subr.mxu0 0.0
      %136 = vmatpush2.msra.mxu0 0.0
      %137 = vmatprep.subr.mxu0 0.0
      %138 = vmatpush2.msra.mxu0 0.0
      %139 = vmatprep.subr.mxu0 0.0
      %140 = vmatpush2.msra.mxu0 0.0
      %141 = vmatprep.subr.mxu0 0.0
      %142 = vmatpush2.msra.mxu0 0.0
      %143 = vmatprep.subr.mxu0 0.0
      %144 = vmatpush2.msra.mxu0 0.0
      %145 = vmatprep.subr.mxu0 0.0
      %146 = vmatpush2.msra.mxu0 0.0
      %147 = vmatprep.subr.mxu0 0.0
      %148 = vmatpush2.msra.mxu0 0.0
      %149 = vmatprep.subr.mxu0 0.0
      %150 = vmatpush2.msra.mxu0 0.0
      %151 = vmatprep.subr.mxu0 0.0
      %152 = vmatpush2.msra.mxu0 0.0
      %153 = vmatprep.subr.mxu0 0.0
      %154 = vmatpush2.msra.mxu0 0.0
      %155 = vmatprep.mubr.f32.mxu0 0.0
      %156 = vmatmul.mubr.f32.gmra.mxu0 %v86
      %v157 = vpop.f32.mrf.mxu0
      %v158 = vadd.f32 0.0, %v157
      %v159 = vpop.f32.mrf.mxu0
      %160 = vdwg.mxu0
      %v161 = vmax.f32 %v158, 0.0
      %v162 = vld [vmem:[%s2] sm:$0x3]
      %v163 = vld [vmem:[%s3] sm:$0x1]
      %v165 = vlaneseq
      %v166 = vshrl.u32 %v165, 7
      %v167 = vsub.s32 0, %v166
      %v168 = vrot.slane %v163, %v167
      %vm170 = vcmask 15360
      %v172 = vsel %vm170, %v161, 0
      %vm174 = vcmask 1041408
      %v176 = vsel %vm174, %v162, 0
      %178 = vmatprep.subr.mxu0 0.0
      %179 = vmatpush1.msra.mxu0 0.0
      %180 = vmatprep.subr.mxu0 0.0
      %181 = vmatpush1.msra.mxu0 0.0
      %182 = vmatprep.subr.mxu0 0.0
      %183 = vmatpush1.msra.mxu0 0.0
      %184 = vmatprep.subr.mxu0 0.0
      %185 = vmatpush1.msra.mxu0 0.0
      %186 = vmatprep.subr.mxu0 0.0
      %187 = vmatpush1.msra.mxu0 0.0
      %188 = vmatprep.subr.mxu0 0.0
      %189 = vmatpush1.msra.mxu0 0.0
      %190 = vmatprep.subr.mxu0 0.0
      %191 = vmatpush1.msra.mxu0 0.0
      %192 = vmatprep.subr.mxu0 0.0
      %193 = vmatpush1.msra.mxu0 0.0
      %194 = vmatprep.subr.mxu0 0.0
      %195 = vmatpush1.msra.mxu0 0.0
      %196 = vmatprep.subr.mxu0 0.0
      %197 = vmatpush1.msra.mxu0 0.0
      %198 = vmatprep.subr.mxu0 0.0
      %199 = vmatpush1.msra.mxu0 0.0
      %200 = vmatprep.subr.mxu0 0.0
      %201 = vmatpush1.msra.mxu0 0.0
      %202 = vmatprep.subr.mxu0 0.0
      %203 = vmatpush1.msra.mxu0 0.0
      %204 = vmatprep.subr.mxu0 0.0
      %205 = vmatpush1.msra.mxu0 0.0
      %206 = vmatprep.subr.mxu0 0.0
      %207 = vmatpush1.msra.mxu0 0.0
      %208 = vmatprep.subr.mxu0 0.0
      %209 = vmatpush1.msra.mxu0 %v176
      %210 = vmatprep.subr.mxu0 0.0
      %211 = vmatpush2.msra.mxu0 0.0
      %212 = vmatprep.subr.mxu0 0.0
      %213 = vmatpush2.msra.mxu0 0.0
      %214 = vmatprep.subr.mxu0 0.0
      %215 = vmatpush2.msra.mxu0 0.0
      %216 = vmatprep.subr.mxu0 0.0
      %217 = vmatpush2.msra.mxu0 0.0
      %218 = vmatprep.subr.mxu0 0.0
      %219 = vmatpush2.msra.mxu0 0.0
      %220 = vmatprep.subr.mxu0 0.0
      %221 = vmatpush2.msra.mxu0 0.0
      %222 = vmatprep.subr.mxu0 0.0
      %223 = vmatpush2.msra.mxu0 0.0
      %224 = vmatprep.subr.mxu0 0.0
      %225 = vmatpush2.msra.mxu0 0.0
      %226 = vmatprep.subr.mxu0 0.0
      %227 = vmatpush2.msra.mxu0 0.0
      %228 = vmatprep.subr.mxu0 0.0
      %229 = vmatpush2.msra.mxu0 0.0
      %230 = vmatprep.subr.mxu0 0.0
      %231 = vmatpush2.msra.mxu0 0.0
      %232 = vmatprep.subr.mxu0 0.0
      %233 = vmatpush2.msra.mxu0 0.0
      %234 = vmatprep.subr.mxu0 0.0
      %235 = vmatpush2.msra.mxu0 0.0
      %236 = vmatprep.subr.mxu0 0.0
      %237 = vmatpush2.msra.mxu0 0.0
      %238 = vmatprep.subr.mxu0 0.0
      %239 = vmatpush2.msra.mxu0 0.0
      %240 = vmatprep.subr.mxu0 0.0
      %241 = vmatpush2.msra.mxu0 0.0
      %242 = vmatprep.mubr.f32.mxu0 0.0
      %243 = vmatmul.mubr.f32.gmra.mxu0 %v172
      %v244 = vpop.f32.mrf.mxu0
      %v245 = vadd.f32 %v168, %v244
      %v246 = vpop.f32.mrf.mxu0
      %247 = vdwg.mxu0
      %v248 = vmul.f32 %v245, 0.032258064
      %vm249 = vcmask 25600
      %v250 = vsel %vm249, %v248, -inf
      %251 = vmax.xlane.f32.xlu0 %v250
      %v252 = vpop.xlane.xlu0 %251
      %v253 = vsub.f32 %v248, %v252
      %v254 = vmul.f32 %v253, 1.442695
      %v255 = vpow.pop %v254
      %v256 = vsel %vm249, %v255, 0.0
      %257 = vadd.xlane.f32.xlu0 %v256
      %v258 = vpop.xlane.xlu0 %257
      %v259 = vrcp.pop %v258
      %v260 = vmul.f32 %v258, %v259
      %v261 = vsub.f32 2.0, %v260
      %v262 = vmul.f32 %v259, %v261
      %v263 = vmul.f32 %v255, %v262
      %264 = vst.msk [vmem:[#allocation6] sm:$0x3] %vm249, %v263
    $region29: #{tpu_custom_call.1} parent=1 // pred_fallthru
      _
    // Predicated region
    $region30: #{tpu_custom_call.1} parent=1 // pred_check
      _
    $region31: #{tpu_custom_call.1} parent=1 // pred_check_branch
      %266 = sbr.rel (0) target = $region33
    $region32: #{tpu_custom_call.1} parent=1 // pred_region
      %s268 = ssub.s32 32, 32
      %269 = vsyncadd [#allocation5], %s268
      %s271 = sshll.u32 [#allocation6], 4
      %s272 = int_to_ptr.vmem [resolvable:$true] %s271
      %274 = dma.vmem_to_hbm [thread:$0]  %s272, 32, %s4, [#allocation5]
    $region33: #{tpu_custom_call.1} parent=1 // pred_fallthru
      _
    // Predicated region
    $region34: #{tpu_custom_call.1} parent=1 // pred_check
      _
    $region35: #{tpu_custom_call.1} parent=1 // pred_check_branch
      %276 = sbr.rel (0) target = $region37
    $region36: #{tpu_custom_call.1} parent=1 // pred_region
      %277 = dma.done [#allocation5], 32
    $region37: #{tpu_custom_call.1} parent=1 // pred_fallthru
      _
    %278 = vsyncpa [#allocation4], 1
    %279 = vsyncpa [#allocation5], 1

</llo_original>
